<compile_context>
chip_gen: v7x
topology: tpu7x:2x2x1
jax: 0.10.0
libtpu: 0.0.40
codegen_flags: <defaults>
</compile_context>

<pallas_src>
import functools

import jax
import jax.numpy as jnp
from jax.experimental import pallas as pl
from jax.experimental.pallas import tpu as pltpu

EPS = 1e-5           # PyTorch BatchNorm1d default eps
MAX_BATCH_TILE = 256


def product_encoder_kernel(
    xp_ref, xd_ref, xo_ref,                    # per-row inputs (tiled on batch)
    tprod_ref, tdept_ref, w1o_ref, b1_ref,     # layer 1 (fc1 split, BN folded)
    w2_ref, b2_ref,                            # layer 2 (BN folded)
    w3_ref, b3_ref,                            # layer 3 (BN folded)
    out_ref,
):
    """Fused embedding-lookup + 3x (Linear -> eval-BN -> ReLU) per batch tile."""
    bt = xo_ref.shape[0]
    n_prod = tprod_ref.shape[0]
    n_dept = tdept_ref.shape[0]

    # Embedding lookup as one-hot matmuls against the pre-folded tables.
    onehot_p = (jax.lax.broadcasted_iota(jnp.int32, (bt, n_prod), 1)
                == xp_ref[...]).astype(jnp.float32)
    onehot_d = (jax.lax.broadcasted_iota(jnp.int32, (bt, n_dept), 1)
                == xd_ref[...]).astype(jnp.float32)

    h = (jnp.dot(onehot_p, tprod_ref[...], preferred_element_type=jnp.float32)
         + jnp.dot(onehot_d, tdept_ref[...], preferred_element_type=jnp.float32)
         + jnp.dot(xo_ref[...], w1o_ref[...], preferred_element_type=jnp.float32)
         + b1_ref[...])
    h = jnp.maximum(h, 0.0)

    h = jnp.dot(h, w2_ref[...], preferred_element_type=jnp.float32) + b2_ref[...]
    h = jnp.maximum(h, 0.0)

    h = jnp.dot(h, w3_ref[...], preferred_element_type=jnp.float32) + b3_ref[...]
    h = jnp.maximum(h, 0.0)

    out_ref[...] = h.astype(out_ref.dtype)


def _fold_bn(w, b, gamma, beta, mean, var):
    s = gamma * jax.lax.rsqrt(var + EPS)       # (1, do)
    return w * s, (b - mean) * s + beta


@functools.partial(jax.jit, static_argnames=("batch_tile",))
def _forward_impl(x_product, x_dept, x_other, params, *, batch_tile):
    b, d_other = x_other.shape
    n_steps = pl.cdiv(b, batch_tile)
    b_pad = n_steps * batch_tile
    hp = jax.lax.Precision.HIGHEST

    # Fold eval-mode BatchNorm into each Linear.
    w1f, b1f = _fold_bn(params["w1"], params["b1"], params["gamma1"],
                        params["beta1"], params["mean1"], params["var1"])
    w2f, b2f = _fold_bn(params["w2"], params["b2"], params["gamma2"],
                        params["beta2"], params["mean2"], params["var2"])
    w3f, b3f = _fold_bn(params["w3"], params["b3"], params["gamma3"],
                        params["beta3"], params["mean3"], params["var3"])

    # Split fc1 by input block and pre-multiply the embedding tables, so the
    # (B, 38) gather+concat intermediate never exists in HBM.
    pe = params["emb_product"].shape[1]
    de = params["emb_dept"].shape[1]
    t_prod = jnp.dot(params["emb_product"], w1f[:pe], precision=hp)       # (num_product, 48)
    t_dept = jnp.dot(params["emb_dept"], w1f[pe:pe + de], precision=hp)   # (num_dept, 48)
    w1_other = w1f[pe + de:]                                              # (d_other, 48)

    # Pad the batch up to a multiple of the tile; padded rows are sliced off.
    pad = b_pad - b
    xp = jnp.pad(x_product.astype(jnp.int32), (0, pad)).reshape(b_pad, 1)
    xd = jnp.pad(x_dept.astype(jnp.int32), (0, pad)).reshape(b_pad, 1)
    xo = jnp.pad(x_other, ((0, pad), (0, 0)))

    const_args = [t_prod, t_dept, w1_other, b1f, w2f, b2f, w3f, b3f]
    const_specs = [pl.BlockSpec(a.shape, lambda i, n=a.ndim: (0,) * n)
                   for a in const_args]

    out = pl.pallas_call(
        product_encoder_kernel,
        out_shape=jax.ShapeDtypeStruct((b_pad, 16), jnp.float32),
        grid=(n_steps,),
        in_specs=[
            pl.BlockSpec((batch_tile, 1), lambda i: (i, 0)),
            pl.BlockSpec((batch_tile, 1), lambda i: (i, 0)),
            pl.BlockSpec((batch_tile, d_other), lambda i: (i, 0)),
        ] + const_specs,
        out_specs=pl.BlockSpec((batch_tile, 16), lambda i: (i, 0)),
        compiler_params=pltpu.CompilerParams(
            dimension_semantics=("parallel",)),
    )(xp, xd, xo, *const_args)
    return out[:b]


def product_encoder_forward(x_product, x_dept, x_other, params):
    b = x_other.shape[0]
    batch_tile = min(MAX_BATCH_TILE, -(-b // 8) * 8)   # multiple of 8, <= 256
    return _forward_impl(x_product, x_dept, x_other, params,
                         batch_tile=batch_tile)


def init_params(key, input_size, num_product, num_dept, product_emb_dim, dept_emb_dim):
    d_in = input_size + product_emb_dim + dept_emb_dim
    dims = [(d_in, 48), (48, 32), (32, 16)]
    ks = jax.random.split(key, 2 + 6 * len(dims))
    p = {
        "emb_product": jax.random.normal(ks[0], (num_product, product_emb_dim), jnp.float32),
        "emb_dept": jax.random.normal(ks[1], (num_dept, dept_emb_dim), jnp.float32),
    }
    for li, (di, do) in enumerate(dims, start=1):
        k = ks[2 + 6 * (li - 1): 2 + 6 * li]
        p[f"w{li}"] = jax.random.normal(k[0], (di, do), jnp.float32) * (1.0 / jnp.sqrt(di))
        p[f"b{li}"] = jax.random.normal(k[1], (1, do), jnp.float32) * 0.1
        p[f"gamma{li}"] = 1.0 + 0.1 * jax.random.normal(k[2], (1, do), jnp.float32)
        p[f"beta{li}"] = 0.1 * jax.random.normal(k[3], (1, do), jnp.float32)
        p[f"mean{li}"] = 0.1 * jax.random.normal(k[4], (1, do), jnp.float32)
        p[f"var{li}"] = jax.random.uniform(k[5], (1, do), jnp.float32, 0.5, 1.5)
    return p


def reference_forward(x_product, x_dept, x_other, params):
    hp = jax.lax.Precision.HIGHEST
    e_product = jnp.take(params["emb_product"], x_product, axis=0)
    e_dept = jnp.take(params["emb_dept"], x_dept, axis=0)
    h = jnp.concatenate([e_product, e_dept, x_other], axis=-1)
    for li in range(1, 4):
        h = jnp.dot(h, params[f"w{li}"], precision=hp) + params[f"b{li}"]
        h = (h - params[f"mean{li}"]) * params[f"gamma{li}"] * jax.lax.rsqrt(
            params[f"var{li}"] + EPS) + params[f"beta{li}"]
        h = jnp.maximum(h, 0.0)
    return h


if __name__ == "__main__":
    input_size = 10
    num_product = 20
    num_dept = 6
    product_emb_dim = 16
    dept_emb_dim = 12

    key = jax.random.PRNGKey(0)
    k_par, k_data = jax.random.split(key)
    params = init_params(k_par, input_size, num_product, num_dept,
                         product_emb_dim, dept_emb_dim)

    # Small batch (single grid step) and a ragged larger batch (padding +
    # multi-step "parallel" grid) to exercise both paths.
    for batch in (8, 300):
        k_prod, k_dept, k_other, k_data = jax.random.split(k_data, 4)
        x_product = jax.random.randint(k_prod, (batch,), 0, num_product, jnp.int32)
        x_dept = jax.random.randint(k_dept, (batch,), 0, num_dept, jnp.int32)
        x_other = jax.random.normal(k_other, (batch, input_size), jnp.float32)

        out = product_encoder_forward(x_product, x_dept, x_other, params)
        out = jax.block_until_ready(out)

        ref = reference_forward(x_product, x_dept, x_other, params)
        assert out.shape == (batch, 16)
        assert jnp.allclose(out, ref, atol=5e-4, rtol=5e-4), (
            f"mismatch at batch={batch}: max abs err "
            f"{float(jnp.max(jnp.abs(out - ref)))}")

    print("KERNEL_OK")
</pallas_src>

<mosaic_0001>
module attributes {stable_mosaic.version = 11 : i64} {
  func.func @product_encoder_kernel(%arg0: i32, %arg1: memref<8x1xi32, #tpu.memory_space<vmem>>, %arg2: memref<8x1xi32, #tpu.memory_space<vmem>>, %arg3: memref<8x10xf32, #tpu.memory_space<vmem>>, %arg4: memref<20x48xf32, #tpu.memory_space<vmem>>, %arg5: memref<6x48xf32, #tpu.memory_space<vmem>>, %arg6: memref<10x48xf32, #tpu.memory_space<vmem>>, %arg7: memref<1x48xf32, #tpu.memory_space<vmem>>, %arg8: memref<48x32xf32, #tpu.memory_space<vmem>>, %arg9: memref<1x32xf32, #tpu.memory_space<vmem>>, %arg10: memref<32x16xf32, #tpu.memory_space<vmem>>, %arg11: memref<1x16xf32, #tpu.memory_space<vmem>>, %arg12: memref<8x16xf32, #tpu.memory_space<vmem>>) attributes {dimension_semantics = [#tpu.dimension_semantics<parallel>], iteration_bounds = array<i64: 1>, scalar_prefetch = 0 : i64, scratch_operands = 0 : i64, tpu.core_type = #tpu.core_type<tc>, window_params = [{transform_indices = @transform_0, window_bounds = array<i64: 8, 1>}, {transform_indices = @transform_1, window_bounds = array<i64: 8, 1>}, {transform_indices = @transform_2, window_bounds = array<i64: 8, 10>}, {pipeline_mode = #tpu.pipeline_mode<synchronous>, transform_indices = @transform_3, window_bounds = array<i64: 20, 48>}, {pipeline_mode = #tpu.pipeline_mode<synchronous>, transform_indices = @transform_4, window_bounds = array<i64: 6, 48>}, {pipeline_mode = #tpu.pipeline_mode<synchronous>, transform_indices = @transform_5, window_bounds = array<i64: 10, 48>}, {pipeline_mode = #tpu.pipeline_mode<synchronous>, transform_indices = @transform_6, window_bounds = array<i64: 1, 48>}, {pipeline_mode = #tpu.pipeline_mode<synchronous>, transform_indices = @transform_7, window_bounds = array<i64: 48, 32>}, {pipeline_mode = #tpu.pipeline_mode<synchronous>, transform_indices = @transform_8, window_bounds = array<i64: 1, 32>}, {pipeline_mode = #tpu.pipeline_mode<synchronous>, transform_indices = @transform_9, window_bounds = array<i64: 32, 16>}, {pipeline_mode = #tpu.pipeline_mode<synchronous>, transform_indices = @transform_10, window_bounds = array<i64: 1, 16>}, {transform_indices = @transform_11, window_bounds = array<i64: 8, 16>}]} {
    %0 = tpu.iota {dimensions = array<i32: 1>} : vector<8x20xi32>
    %c0 = arith.constant 0 : index
    %c0_0 = arith.constant 0 : index
    %1 = vector.load %arg1[%c0, %c0_0] : memref<8x1xi32, #tpu.memory_space<vmem>>, vector<8x1xi32>
    %2 = vector.broadcast %1 : vector<8x1xi32> to vector<8x20xi32>
    %3 = arith.cmpi eq, %0, %2 : vector<8x20xi32>
    %4 = arith.extui %3 : vector<8x20xi1> to vector<8x20xi32>
    %5 = arith.sitofp %4 : vector<8x20xi32> to vector<8x20xf32>
    %6 = tpu.iota {dimensions = array<i32: 1>} : vector<8x6xi32>
    %c0_1 = arith.constant 0 : index
    %c0_2 = arith.constant 0 : index
    %7 = vector.load %arg2[%c0_1, %c0_2] : memref<8x1xi32, #tpu.memory_space<vmem>>, vector<8x1xi32>
    %8 = vector.broadcast %7 : vector<8x1xi32> to vector<8x6xi32>
    %9 = arith.cmpi eq, %6, %8 : vector<8x6xi32>
    %10 = arith.extui %9 : vector<8x6xi1> to vector<8x6xi32>
    %11 = arith.sitofp %10 : vector<8x6xi32> to vector<8x6xf32>
    %c0_3 = arith.constant 0 : index
    %c0_4 = arith.constant 0 : index
    %12 = vector.load %arg4[%c0_3, %c0_4] : memref<20x48xf32, #tpu.memory_space<vmem>>, vector<20x48xf32>
    %cst = arith.constant dense<0.000000e+00> : vector<8x48xf32>
    %13 = tpu.matmul %5, %12, %cst {dimension_numbers = #tpu.dot_dimension_numbers<[1], [0], [0], [1], [0, 0, 1, 1], [], []>} : vector<8x20xf32>, vector<20x48xf32>, vector<8x48xf32> -> vector<8x48xf32>
    %c0_5 = arith.constant 0 : index
    %c0_6 = arith.constant 0 : index
    %14 = vector.load %arg5[%c0_5, %c0_6] : memref<6x48xf32, #tpu.memory_space<vmem>>, vector<6x48xf32>
    %cst_7 = arith.constant dense<0.000000e+00> : vector<8x48xf32>
    %15 = tpu.matmul %11, %14, %cst_7 {dimension_numbers = #tpu.dot_dimension_numbers<[1], [0], [0], [1], [0, 0, 1, 1], [], []>} : vector<8x6xf32>, vector<6x48xf32>, vector<8x48xf32> -> vector<8x48xf32>
    %16 = arith.addf %13, %15 : vector<8x48xf32>
    %c0_8 = arith.constant 0 : index
    %c0_9 = arith.constant 0 : index
    %17 = vector.load %arg3[%c0_8, %c0_9] : memref<8x10xf32, #tpu.memory_space<vmem>>, vector<8x10xf32>
    %c0_10 = arith.constant 0 : index
    %c0_11 = arith.constant 0 : index
    %18 = vector.load %arg6[%c0_10, %c0_11] : memref<10x48xf32, #tpu.memory_space<vmem>>, vector<10x48xf32>
    %cst_12 = arith.constant dense<0.000000e+00> : vector<8x48xf32>
    %19 = tpu.matmul %17, %18, %cst_12 {dimension_numbers = #tpu.dot_dimension_numbers<[1], [0], [0], [1], [0, 0, 1, 1], [], []>} : vector<8x10xf32>, vector<10x48xf32>, vector<8x48xf32> -> vector<8x48xf32>
    %20 = arith.addf %16, %19 : vector<8x48xf32>
    %c0_13 = arith.constant 0 : index
    %c0_14 = arith.constant 0 : index
    %21 = vector.load %arg7[%c0_13, %c0_14] : memref<1x48xf32, #tpu.memory_space<vmem>>, vector<1x48xf32>
    %22 = vector.broadcast %21 : vector<1x48xf32> to vector<8x48xf32>
    %23 = arith.addf %20, %22 : vector<8x48xf32>
    %cst_15 = arith.constant 0.000000e+00 : f32
    %24 = vector.broadcast %cst_15 : f32 to vector<8x48xf32>
    %25 = arith.maximumf %23, %24 : vector<8x48xf32>
    %c0_16 = arith.constant 0 : index
    %c0_17 = arith.constant 0 : index
    %26 = vector.load %arg8[%c0_16, %c0_17] : memref<48x32xf32, #tpu.memory_space<vmem>>, vector<48x32xf32>
    %cst_18 = arith.constant dense<0.000000e+00> : vector<8x32xf32>
    %27 = tpu.matmul %25, %26, %cst_18 {dimension_numbers = #tpu.dot_dimension_numbers<[1], [0], [0], [1], [0, 0, 1, 1], [], []>} : vector<8x48xf32>, vector<48x32xf32>, vector<8x32xf32> -> vector<8x32xf32>
    %c0_19 = arith.constant 0 : index
    %c0_20 = arith.constant 0 : index
    %28 = vector.load %arg9[%c0_19, %c0_20] : memref<1x32xf32, #tpu.memory_space<vmem>>, vector<1x32xf32>
    %29 = vector.broadcast %28 : vector<1x32xf32> to vector<8x32xf32>
    %30 = arith.addf %27, %29 : vector<8x32xf32>
    %cst_21 = arith.constant 0.000000e+00 : f32
    %31 = vector.broadcast %cst_21 : f32 to vector<8x32xf32>
    %32 = arith.maximumf %30, %31 : vector<8x32xf32>
    %c0_22 = arith.constant 0 : index
    %c0_23 = arith.constant 0 : index
    %33 = vector.load %arg10[%c0_22, %c0_23] : memref<32x16xf32, #tpu.memory_space<vmem>>, vector<32x16xf32>
    %cst_24 = arith.constant dense<0.000000e+00> : vector<8x16xf32>
    %34 = tpu.matmul %32, %33, %cst_24 {dimension_numbers = #tpu.dot_dimension_numbers<[1], [0], [0], [1], [0, 0, 1, 1], [], []>} : vector<8x32xf32>, vector<32x16xf32>, vector<8x16xf32> -> vector<8x16xf32>
    %c0_25 = arith.constant 0 : index
    %c0_26 = arith.constant 0 : index
    %35 = vector.load %arg11[%c0_25, %c0_26] : memref<1x16xf32, #tpu.memory_space<vmem>>, vector<1x16xf32>
    %36 = vector.broadcast %35 : vector<1x16xf32> to vector<8x16xf32>
    %37 = arith.addf %34, %36 : vector<8x16xf32>
    %cst_27 = arith.constant 0.000000e+00 : f32
    %38 = vector.broadcast %cst_27 : f32 to vector<8x16xf32>
    %39 = arith.maximumf %37, %38 : vector<8x16xf32>
    %c0_28 = arith.constant 0 : index
    %c0_29 = arith.constant 0 : index
    %40 = vector.load %arg12[%c0_28, %c0_29] : memref<8x16xf32, #tpu.memory_space<vmem>>, vector<8x16xf32>
    tpu.vector_store %arg12[%c0_28, %c0_29], %39 {strides = array<i32>} : memref<8x16xf32, #tpu.memory_space<vmem>>, vector<8x16xf32>,
    return
  }
  func.func @transform_0(%arg0: i32) -> (i32, i32) {
    %c0_i32 = arith.constant 0 : i32
    %c0_i32_0 = arith.constant 0 : i32
    return %arg0, %c0_i32 : i32, i32
  }
  func.func @transform_1(%arg0: i32) -> (i32, i32) {
    %c0_i32 = arith.constant 0 : i32
    %c0_i32_0 = arith.constant 0 : i32
    return %arg0, %c0_i32 : i32, i32
  }
  func.func @transform_2(%arg0: i32) -> (i32, i32) {
    %c0_i32 = arith.constant 0 : i32
    %c0_i32_0 = arith.constant 0 : i32
    return %arg0, %c0_i32 : i32, i32
  }
  func.func @transform_3(%arg0: i32) -> (i32, i32) {
    %c0_i32 = arith.constant 0 : i32
    %c0_i32_0 = arith.constant 0 : i32
    %c0_i32_1 = arith.constant 0 : i32
    return %c0_i32, %c0_i32_0 : i32, i32
  }
  func.func @transform_4(%arg0: i32) -> (i32, i32) {
    %c0_i32 = arith.constant 0 : i32
    %c0_i32_0 = arith.constant 0 : i32
    %c0_i32_1 = arith.constant 0 : i32
    return %c0_i32, %c0_i32_0 : i32, i32
  }
  func.func @transform_5(%arg0: i32) -> (i32, i32) {
    %c0_i32 = arith.constant 0 : i32
    %c0_i32_0 = arith.constant 0 : i32
    %c0_i32_1 = arith.constant 0 : i32
    return %c0_i32, %c0_i32_0 : i32, i32
  }
  func.func @transform_6(%arg0: i32) -> (i32, i32) {
    %c0_i32 = arith.constant 0 : i32
    %c0_i32_0 = arith.constant 0 : i32
    %c0_i32_1 = arith.constant 0 : i32
    return %c0_i32, %c0_i32_0 : i32, i32
  }
  func.func @transform_7(%arg0: i32) -> (i32, i32) {
    %c0_i32 = arith.constant 0 : i32
    %c0_i32_0 = arith.constant 0 : i32
    %c0_i32_1 = arith.constant 0 : i32
    return %c0_i32, %c0_i32_0 : i32, i32
  }
  func.func @transform_8(%arg0: i32) -> (i32, i32) {
    %c0_i32 = arith.constant 0 : i32
    %c0_i32_0 = arith.constant 0 : i32
    %c0_i32_1 = arith.constant 0 : i32
    return %c0_i32, %c0_i32_0 : i32, i32
  }
  func.func @transform_9(%arg0: i32) -> (i32, i32) {
    %c0_i32 = arith.constant 0 : i32
    %c0_i32_0 = arith.constant 0 : i32
    %c0_i32_1 = arith.constant 0 : i32
    return %c0_i32, %c0_i32_0 : i32, i32
  }
  func.func @transform_10(%arg0: i32) -> (i32, i32) {
    %c0_i32 = arith.constant 0 : i32
    %c0_i32_0 = arith.constant 0 : i32
    %c0_i32_1 = arith.constant 0 : i32
    return %c0_i32, %c0_i32_0 : i32, i32
  }
  func.func @transform_11(%arg0: i32) -> (i32, i32) {
    %c0_i32 = arith.constant 0 : i32
    %c0_i32_0 = arith.constant 0 : i32
    return %arg0, %c0_i32 : i32, i32
  }
}

</mosaic_0001>

<llo_original>
// kernel: _forward_impl.1
$region0: #{_forward_impl.1}
  #allocation0 [shape = 'u32[]', space=smem, size = 0x4, offset = 0x4, fixed_abs, tag = 'smem constant byte address 0x4 - core index']
  #allocation1 [shape = 'u32[144,128]{1,0:T(1,128)}', space=vmem, size = 0x12000, scoped, tag = 'internal scratch']
  %s0 = inlined_call_operand.vmem [shape: s32[8,1], index: 0, kind: input, shape index: {}]
  %s1 = inlined_call_operand.vmem [shape: s32[8,1], index: 1, kind: input, shape index: {}]
  %s2 = inlined_call_operand.vmem [shape: f32[8,10], index: 2, kind: input, shape index: {}]
  %s3 = inlined_call_operand.vmem [shape: f32[20,48], index: 3, kind: input, shape index: {}]
  %s4 = inlined_call_operand.vmem [shape: f32[6,48], index: 4, kind: input, shape index: {}]
  %s5 = inlined_call_operand.vmem [shape: f32[10,48], index: 5, kind: input, shape index: {}]
  %s6 = inlined_call_operand.vmem [shape: f32[1,48], index: 6, kind: input, shape index: {}]
  %s7 = inlined_call_operand.vmem [shape: f32[48,32], index: 7, kind: input, shape index: {}]
  %s8 = inlined_call_operand.vmem [shape: f32[1,32], index: 8, kind: input, shape index: {}]
  %s9 = inlined_call_operand.vmem [shape: f32[32,16], index: 9, kind: input, shape index: {}]
  %s10 = inlined_call_operand.vmem [shape: f32[1,16], index: 10, kind: input, shape index: {}]
  %s11 = inlined_call_operand.hbm [shape: f32[8,16], index: 11, kind: output, shape index: {}]
  %s12 = sld [smem:[#allocation0]]
  $region54: #{_forward_impl.1} parent=0
    _
  %s14 = ssub.s32 1, %s12
  %s15 = scalar_select 0, %s14, %s12
  $region1: #{_forward_impl.1} parent=0
    #allocation2 [shape = 'u8[4096]{0}', space=vmem, size = 0x1000, scoped, tag = 'output window, operand 0, single buffered']
    #allocation3 [shape = 's32[1]{0}', space=sflag, size = 0x4, scoped, tag = 'scoped memory for _forward_impl.1']
    %16 = vsyncpa [#allocation3], 0
    // Predicated region
    $region2: #{_forward_impl.1} parent=1 // pred_check
      _
    $region3: #{_forward_impl.1} parent=1 // pred_check_branch
      %18 = sbr.rel (0) target = $region5
    $region4: #{_forward_impl.1} parent=1 // pred_region
      _
    $region5: #{_forward_impl.1} parent=1 // pred_fallthru
      _
    // Predicated region
    $region6: #{_forward_impl.1} parent=1 // pred_check
      _
    $region7: #{_forward_impl.1} parent=1 // pred_check_branch
      %20 = sbr.rel (0) target = $region9
    $region8: #{_forward_impl.1} parent=1 // pred_region
      _
    $region9: #{_forward_impl.1} parent=1 // pred_fallthru
      _
    // Predicated region
    $region10: #{_forward_impl.1} parent=1 // pred_check
      _
    $region11: #{_forward_impl.1} parent=1 // pred_check_branch
      %22 = sbr.rel (0) target = $region13
    $region12: #{_forward_impl.1} parent=1 // pred_region
      _
    $region13: #{_forward_impl.1} parent=1 // pred_fallthru
      _
    // Predicated region
    $region14: #{_forward_impl.1} parent=1 // pred_check
      _
    $region15: #{_forward_impl.1} parent=1 // pred_check_branch
      %24 = sbr.rel (0) target = $region17
    $region16: #{_forward_impl.1} parent=1 // pred_region
      _
    $region17: #{_forward_impl.1} parent=1 // pred_fallthru
      _
    // Predicated region
    $region18: #{_forward_impl.1} parent=1 // pred_check
      _
    $region19: #{_forward_impl.1} parent=1 // pred_check_branch
      %26 = sbr.rel (0) target = $region21
    $region20: #{_forward_impl.1} parent=1 // pred_region
      _
    $region21: #{_forward_impl.1} parent=1 // pred_fallthru
      _
    // Predicated region
    $region22: #{_forward_impl.1} parent=1 // pred_check
      _
    $region23: #{_forward_impl.1} parent=1 // pred_check_branch
      %28 = sbr.rel (0) target = $region25
    $region24: #{_forward_impl.1} parent=1 // pred_region
      _
    $region25: #{_forward_impl.1} parent=1 // pred_fallthru
      _
    // Predicated region
    $region26: #{_forward_impl.1} parent=1 // pred_check
      _
    $region27: #{_forward_impl.1} parent=1 // pred_check_branch
      %30 = sbr.rel (0) target = $region29
    $region28: #{_forward_impl.1} parent=1 // pred_region
      _
    $region29: #{_forward_impl.1} parent=1 // pred_fallthru
      _
    // Predicated region
    $region30: #{_forward_impl.1} parent=1 // pred_check
      _
    $region31: #{_forward_impl.1} parent=1 // pred_check_branch
      %32 = sbr.rel (0) target = $region33
    $region32: #{_forward_impl.1} parent=1 // pred_region
      _
    $region33: #{_forward_impl.1} parent=1 // pred_fallthru
      _
    // Predicated region
    $region34: #{_forward_impl.1} parent=1 // pred_check
      _
    $region35: #{_forward_impl.1} parent=1 // pred_check_branch
      %34 = sbr.rel (0) target = $region37
    $region36: #{_forward_impl.1} parent=1 // pred_region
      _
    $region37: #{_forward_impl.1} parent=1 // pred_fallthru
      _
    // Predicated region
    $region38: #{_forward_impl.1} parent=1 // pred_check
      _
    $region39: #{_forward_impl.1} parent=1 // pred_check_branch
      %36 = sbr.rel (0) target = $region41
    $region40: #{_forward_impl.1} parent=1 // pred_region
      _
    $region41: #{_forward_impl.1} parent=1 // pred_fallthru
      _
    // Predicated region
    $region42: #{_forward_impl.1} parent=1 // pred_check
      _
    $region43: #{_forward_impl.1} parent=1 // pred_check_branch
      %38 = sbr.rel (0) target = $region45
    $region44: #{_forward_impl.1} parent=1 // pred_region
      _
    $region45: #{_forward_impl.1} parent=1 // pred_fallthru
      _
    %v39 = vlaneseq
    %v40 = vand.u32 %v39, 127
    %v41 = vld [vmem:[%s0] sm:$0xff]
    %42 = vset.pattern.permute.xlu0 0
    %43 = vperm.xlu0 %42, %v41
    %v44 = vpop.permute.xlu0 %43
    %vm45 = vcmp.eq.s32.totalorder %v40, %v44
    %v46 = vsel %vm45, 1, 0
    %v47 = vcvt.s32.f32 %v46
    %v48 = vld [vmem:[%s1] sm:$0xff]
    %49 = vset.pattern.permute.xlu0 0
    %50 = vperm.xlu0 %49, %v48
    %v51 = vpop.permute.xlu0 %50
    %vm52 = vcmp.eq.s32.totalorder %v40, %v51
    %v53 = vsel %vm52, 1, 0
    %v54 = vcvt.s32.f32 %v53
    %v55 = vld [vmem:[%s3] sm:$0xff]
    %v56 = vld [vmem:[%s3 + $0x8] sm:$0xff]
    %v57 = vld [vmem:[%s3 + $0x10] sm:$0xf]
    %v58 = vld [vmem:[%s4] sm:$0x3f]
    %vm59 = vcmask 48128
    %v61 = vsel %vm59, %v54, 0
    %vm63 = vcmask 1045504
    %v65 = vsel %vm63, %v58, 0
    %67 = vmatprep.subr.mxu0 0.0
    %68 = vmatpush1.msra.mxu0 %v65
    %69 = vmatprep.subr.mxu0 0.0
    %70 = vmatpush1.msra.mxu0 0.0
    %71 = vmatprep.subr.mxu0 0.0
    %72 = vmatpush1.msra.mxu0 0.0
    %73 = vmatprep.subr.mxu0 0.0
    %74 = vmatpush1.msra.mxu0 0.0
    %75 = vmatprep.subr.mxu0 0.0
    %76 = vmatpush1.msra.mxu0 0.0
    %77 = vmatprep.subr.mxu0 0.0
    %78 = vmatpush1.msra.mxu0 0.0
    %79 = vmatprep.subr.mxu0 0.0
    %80 = vmatpush1.msra.mxu0 0.0
    %81 = vmatprep.subr.mxu0 0.0
    %82 = vmatpush1.msra.mxu0 0.0
    %83 = vmatprep.subr.mxu0 0.0
    %84 = vmatpush1.msra.mxu0 0.0
    %85 = vmatprep.subr.mxu0 0.0
    %86 = vmatpush1.msra.mxu0 0.0
    %87 = vmatprep.subr.mxu0 0.0
    %88 = vmatpush1.msra.mxu0 0.0
    %89 = vmatprep.subr.mxu0 0.0
    %90 = vmatpush1.msra.mxu0 0.0
    %91 = vmatprep.subr.mxu0 0.0
    %92 = vmatpush1.msra.mxu0 0.0
    %93 = vmatprep.subr.mxu0 0.0
    %94 = vmatpush1.msra.mxu0 0.0
    %95 = vmatprep.subr.mxu0 0.0
    %96 = vmatpush1.msra.mxu0 0.0
    %97 = vmatprep.subr.mxu0 0.0
    %98 = vmatpush1.msra.mxu0 0.0
    %99 = vmatprep.subr.mxu0 0.0
    %100 = vmatpush1.msra.mxu0 0.0
    %101 = vmatprep.subr.mxu0 0.0
    %102 = vmatpush1.msra.mxu0 0.0
    %103 = vmatprep.subr.mxu0 0.0
    %104 = vmatpush1.msra.mxu0 0.0
    %105 = vmatprep.subr.mxu0 0.0
    %106 = vmatpush1.msra.mxu0 0.0
    %107 = vmatprep.subr.mxu0 0.0
    %108 = vmatpush1.msra.mxu0 0.0
    %109 = vmatprep.subr.mxu0 0.0
    %110 = vmatpush1.msra.mxu0 0.0
    %111 = vmatprep.subr.mxu0 0.0
    %112 = vmatpush1.msra.mxu0 0.0
    %113 = vmatprep.subr.mxu0 0.0
    %114 = vmatpush1.msra.mxu0 0.0
    %115 = vmatprep.subr.mxu0 0.0
    %116 = vmatpush1.msra.mxu0 0.0
    %117 = vmatprep.subr.mxu0 0.0
    %118 = vmatpush1.msra.mxu0 0.0
    %119 = vmatprep.subr.mxu0 0.0
    %120 = vmatpush1.msra.mxu0 0.0
    %121 = vmatprep.subr.mxu0 0.0
    %122 = vmatpush1.msra.mxu0 0.0
    %123 = vmatprep.subr.mxu0 0.0
    %124 = vmatpush1.msra.mxu0 0.0
    %125 = vmatprep.subr.mxu0 0.0
    %126 = vmatpush1.msra.mxu0 0.0
    %127 = vmatprep.subr.mxu0 0.0
    %128 = vmatpush1.msra.mxu0 0.0
    %129 = vmatprep.subr.mxu0 0.0
    %130 = vmatpush1.msra.mxu0 0.0
    %131 = vmatprep.mubr.f32.mxu0 0.0
    %132 = vmatmul.mubr.f32.gmra.mrb[0].mxu0 %v61
    %v133 = vpop.f32.mrb[0].mxu0
    %v134 = vadd.f32 0.0, %v133
    %v135 = vpop.f32.mrb[0].mxu0
    %136 = vdwg.mxu0
    %vm137 = vcmask 162816
    %v139 = vsel %vm137, %v47, 0
    %vm141 = vcmask 1043456
    %v143 = vsel %vm141, %v57, 0
    %145 = vmatprep.subr.mxu0 0.0
    %146 = vmatpush1.msra.mxu0 %v55
    %147 = vmatprep.subr.mxu0 0.0
    %148 = vmatpush1.msra.mxu0 %v56
    %149 = vmatprep.subr.mxu0 0.0
    %150 = vmatpush1.msra.mxu0 %v143
    %151 = vmatprep.subr.mxu0 0.0
    %152 = vmatpush1.msra.mxu0 0.0
    %153 = vmatprep.subr.mxu0 0.0
    %154 = vmatpush1.msra.mxu0 0.0
    %155 = vmatprep.subr.mxu0 0.0
    %156 = vmatpush1.msra.mxu0 0.0
    %157 = vmatprep.subr.mxu0 0.0
    %158 = vmatpush1.msra.mxu0 0.0
    %159 = vmatprep.subr.mxu0 0.0
    %160 = vmatpush1.msra.mxu0 0.0
    %161 = vmatprep.subr.mxu0 0.0
    %162 = vmatpush1.msra.mxu0 0.0
    %163 = vmatprep.subr.mxu0 0.0
    %164 = vmatpush1.msra.mxu0 0.0
    %165 = vmatprep.subr.mxu0 0.0
    %166 = vmatpush1.msra.mxu0 0.0
    %167 = vmatprep.subr.mxu0 0.0
    %168 = vmatpush1.msra.mxu0 0.0
    %169 = vmatprep.subr.mxu0 0.0
    %170 = vmatpush1.msra.mxu0 0.0
    %171 = vmatprep.subr.mxu0 0.0
    %172 = vmatpush1.msra.mxu0 0.0
    %173 = vmatprep.subr.mxu0 0.0
    %174 = vmatpush1.msra.mxu0 0.0
    %175 = vmatprep.subr.mxu0 0.0
    %176 = vmatpush1.msra.mxu0 0.0
    %177 = vmatprep.subr.mxu0 0.0
    %178 = vmatpush1.msra.mxu0 0.0
    %179 = vmatprep.subr.mxu0 0.0
    %180 = vmatpush1.msra.mxu0 0.0
    %181 = vmatprep.subr.mxu0 0.0
    %182 = vmatpush1.msra.mxu0 0.0
    %183 = vmatprep.subr.mxu0 0.0
    %184 = vmatpush1.msra.mxu0 0.0
    %185 = vmatprep.subr.mxu0 0.0
    %186 = vmatpush1.msra.mxu0 0.0
    %187 = vmatprep.subr.mxu0 0.0
    %188 = vmatpush1.msra.mxu0 0.0
    %189 = vmatprep.subr.mxu0 0.0
    %190 = vmatpush1.msra.mxu0 0.0
    %191 = vmatprep.subr.mxu0 0.0
    %192 = vmatpush1.msra.mxu0 0.0
    %193 = vmatprep.subr.mxu0 0.0
    %194 = vmatpush1.msra.mxu0 0.0
    %195 = vmatprep.subr.mxu0 0.0
    %196 = vmatpush1.msra.mxu0 0.0
    %197 = vmatprep.subr.mxu0 0.0
    %198 = vmatpush1.msra.mxu0 0.0
    %199 = vmatprep.subr.mxu0 0.0
    %200 = vmatpush1.msra.mxu0 0.0
    %201 = vmatprep.subr.mxu0 0.0
    %202 = vmatpush1.msra.mxu0 0.0
    %203 = vmatprep.subr.mxu0 0.0
    %204 = vmatpush1.msra.mxu0 0.0
    %205 = vmatprep.subr.mxu0 0.0
    %206 = vmatpush1.msra.mxu0 0.0
    %207 = vmatprep.subr.mxu0 0.0
    %208 = vmatpush1.msra.mxu0 0.0
    %209 = vmatprep.mubr.f32.mxu0 0.0
    %210 = vmatmul.mubr.f32.gmra.mrb[0].mxu0 %v139
    %v211 = vpop.f32.mrb[0].mxu0
    %v212 = vadd.f32 %v134, %v211
    %v213 = vpop.f32.mrb[0].mxu0
    %214 = vdwg.mxu0
    %v215 = vld [vmem:[%s2] sm:$0xff]
    %v216 = vld [vmem:[%s5] sm:$0xff]
    %v217 = vld [vmem:[%s5 + $0x8] sm:$0x3]
    %vm218 = vcmask 80896
    %v220 = vsel %vm218, %v215, 0
    %vm222 = vcmask 1041408
    %v224 = vsel %vm222, %v217, 0
    %226 = vmatprep.subr.mxu0 0.0
    %227 = vmatpush1.msra.mxu0 %v216
    %228 = vmatprep.subr.mxu0 0.0
    %229 = vmatpush1.msra.mxu0 %v224
    %230 = vmatprep.subr.mxu0 0.0
    %231 = vmatpush1.msra.mxu0 0.0
    %232 = vmatprep.subr.mxu0 0.0
    %233 = vmatpush1.msra.mxu0 0.0
    %234 = vmatprep.subr.mxu0 0.0
    %235 = vmatpush1.msra.mxu0 0.0
    %236 = vmatprep.subr.mxu0 0.0
    %237 = vmatpush1.msra.mxu0 0.0
    %238 = vmatprep.subr.mxu0 0.0
    %239 = vmatpush1.msra.mxu0 0.0
    %240 = vmatprep.subr.mxu0 0.0
    %241 = vmatpush1.msra.mxu0 0.0
    %242 = vmatprep.subr.mxu0 0.0
    %243 = vmatpush1.msra.mxu0 0.0
    %244 = vmatprep.subr.mxu0 0.0
    %245 = vmatpush1.msra.mxu0 0.0
    %246 = vmatprep.subr.mxu0 0.0
    %247 = vmatpush1.msra.mxu0 0.0
    %248 = vmatprep.subr.mxu0 0.0
    %249 = vmatpush1.msra.mxu0 0.0
    %250 = vmatprep.subr.mxu0 0.0
    %251 = vmatpush1.msra.mxu0 0.0
    %252 = vmatprep.subr.mxu0 0.0
    %253 = vmatpush1.msra.mxu0 0.0
    %254 = vmatprep.subr.mxu0 0.0
    %255 = vmatpush1.msra.mxu0 0.0
    %256 = vmatprep.subr.mxu0 0.0
    %257 = vmatpush1.msra.mxu0 0.0
    %258 = vmatprep.subr.mxu0 0.0
    %259 = vmatpush1.msra.mxu0 0.0
    %260 = vmatprep.subr.mxu0 0.0
    %261 = vmatpush1.msra.mxu0 0.0
    %262 = vmatprep.subr.mxu0 0.0
    %263 = vmatpush1.msra.mxu0 0.0
    %264 = vmatprep.subr.mxu0 0.0
    %265 = vmatpush1.msra.mxu0 0.0
    %266 = vmatprep.subr.mxu0 0.0
    %267 = vmatpush1.msra.mxu0 0.0
    %268 = vmatprep.subr.mxu0 0.0
    %269 = vmatpush1.msra.mxu0 0.0
    %270 = vmatprep.subr.mxu0 0.0
    %271 = vmatpush1.msra.mxu0 0.0
    %272 = vmatprep.subr.mxu0 0.0
    %273 = vmatpush1.msra.mxu0 0.0
    %274 = vmatprep.subr.mxu0 0.0
    %275 = vmatpush1.msra.mxu0 0.0
    %276 = vmatprep.subr.mxu0 0.0
    %277 = vmatpush1.msra.mxu0 0.0
    %278 = vmatprep.subr.mxu0 0.0
    %279 = vmatpush1.msra.mxu0 0.0
    %280 = vmatprep.subr.mxu0 0.0
    %281 = vmatpush1.msra.mxu0 0.0
    %282 = vmatprep.subr.mxu0 0.0
    %283 = vmatpush1.msra.mxu0 0.0
    %284 = vmatprep.subr.mxu0 0.0
    %285 = vmatpush1.msra.mxu0 0.0
    %286 = vmatprep.subr.mxu0 0.0
    %287 = vmatpush1.msra.mxu0 0.0
    %288 = vmatprep.subr.mxu0 0.0
    %289 = vmatpush1.msra.mxu0 0.0
    %290 = vmatprep.mubr.f32.mxu0 0.0
    %291 = vmatmul.mubr.f32.gmra.mrb[0].mxu0 %v220
    %v292 = vpop.f32.mrb[0].mxu0
    %v293 = vadd.f32 0.0, %v292
    %v294 = vpop.f32.mrb[0].mxu0
    %295 = vdwg.mxu0
    %v296 = vadd.f32 %v212, %v293
    %v297 = vld [vmem:[%s6] sm:$0x1]
    %v299 = vlaneseq
    %v300 = vshrl.u32 %v299, 7
    %v301 = vsub.s32 0, %v300
    %v302 = vrot.slane %v297, %v301
    %v304 = vadd.f32 %v296, %v302
    %v305 = vmax.f32 %v304, 0.0
    %v306 = vld [vmem:[%s7] sm:$0xff]
    %v307 = vld [vmem:[%s7 + $0x8] sm:$0xff]
    %v308 = vld [vmem:[%s7 + $0x10] sm:$0xff]
    %v309 = vld [vmem:[%s7 + $0x18] sm:$0xff]
    %v310 = vld [vmem:[%s7 + $0x20] sm:$0xff]
    %v311 = vld [vmem:[%s7 + $0x28] sm:$0xff]
    %v312 = vld [vmem:[%s8] sm:$0x1]
    %v314 = vlaneseq
    %v315 = vshrl.u32 %v314, 7
    %v316 = vsub.s32 0, %v315
    %v317 = vrot.slane %v312, %v316
    %vm319 = vcmask 392192
    %v321 = vsel %vm319, %v305, 0
    %323 = vmatprep.subr.mxu0 0.0
    %324 = vmatpush1.msra.mxu0 %v306
    %325 = vmatprep.subr.mxu0 0.0
    %326 = vmatpush1.msra.mxu0 %v307
    %327 = vmatprep.subr.mxu0 0.0
    %328 = vmatpush1.msra.mxu0 %v308
    %329 = vmatprep.subr.mxu0 0.0
    %330 = vmatpush1.msra.mxu0 %v309
    %331 = vmatprep.subr.mxu0 0.0
    %332 = vmatpush1.msra.mxu0 %v310
    %333 = vmatprep.subr.mxu0 0.0
    %334 = vmatpush1.msra.mxu0 %v311
    %335 = vmatprep.subr.mxu0 0.0
    %336 = vmatpush1.msra.mxu0 0.0
    %337 = vmatprep.subr.mxu0 0.0
    %338 = vmatpush1.msra.mxu0 0.0
    %339 = vmatprep.subr.mxu0 0.0
    %340 = vmatpush1.msra.mxu0 0.0
    %341 = vmatprep.subr.mxu0 0.0
    %342 = vmatpush1.msra.mxu0 0.0
    %343 = vmatprep.subr.mxu0 0.0
    %344 = vmatpush1.msra.mxu0 0.0
    %345 = vmatprep.subr.mxu0 0.0
    %346 = vmatpush1.msra.mxu0 0.0
    %347 = vmatprep.subr.mxu0 0.0
    %348 = vmatpush1.msra.mxu0 0.0
    %349 = vmatprep.subr.mxu0 0.0
    %350 = vmatpush1.msra.mxu0 0.0
    %351 = vmatprep.subr.mxu0 0.0
    %352 = vmatpush1.msra.mxu0 0.0
    %353 = vmatprep.subr.mxu0 0.0
    %354 = vmatpush1.msra.mxu0 0.0
    %355 = vmatprep.subr.mxu0 0.0
    %356 = vmatpush1.msra.mxu0 0.0
    %357 = vmatprep.subr.mxu0 0.0
    %358 = vmatpush1.msra.mxu0 0.0
    %359 = vmatprep.subr.mxu0 0.0
    %360 = vmatpush1.msra.mxu0 0.0
    %361 = vmatprep.subr.mxu0 0.0
    %362 = vmatpush1.msra.mxu0 0.0
    %363 = vmatprep.subr.mxu0 0.0
    %364 = vmatpush1.msra.mxu0 0.0
    %365 = vmatprep.subr.mxu0 0.0
    %366 = vmatpush1.msra.mxu0 0.0
    %367 = vmatprep.subr.mxu0 0.0
    %368 = vmatpush1.msra.mxu0 0.0
    %369 = vmatprep.subr.mxu0 0.0
    %370 = vmatpush1.msra.mxu0 0.0
    %371 = vmatprep.subr.mxu0 0.0
    %372 = vmatpush1.msra.mxu0 0.0
    %373 = vmatprep.subr.mxu0 0.0
    %374 = vmatpush1.msra.mxu0 0.0
    %375 = vmatprep.subr.mxu0 0.0
    %376 = vmatpush1.msra.mxu0 0.0
    %377 = vmatprep.subr.mxu0 0.0
    %378 = vmatpush1.msra.mxu0 0.0
    %379 = vmatprep.subr.mxu0 0.0
    %380 = vmatpush1.msra.mxu0 0.0
    %381 = vmatprep.subr.mxu0 0.0
    %382 = vmatpush1.msra.mxu0 0.0
    %383 = vmatprep.subr.mxu0 0.0
    %384 = vmatpush1.msra.mxu0 0.0
    %385 = vmatprep.subr.mxu0 0.0
    %386 = vmatpush1.msra.mxu0 0.0
    %387 = vmatprep.mubr.f32.mxu0 0.0
    %388 = vmatmul.mubr.f32.gmra.mrb[0].mxu0 %v321
    %v389 = vpop.f32.mrb[0].mxu0
    %v390 = vadd.f32 %v317, %v389
    %v391 = vpop.f32.mrb[0].mxu0
    %392 = vdwg.mxu0
    %v393 = vmax.f32 %v390, 0.0
    %v394 = vld [vmem:[%s9] sm:$0xff]
    %v395 = vld [vmem:[%s9 + $0x8] sm:$0xff]
    %v396 = vld [vmem:[%s9 + $0x10] sm:$0xff]
    %v397 = vld [vmem:[%s9 + $0x18] sm:$0xff]
    %v398 = vld [vmem:[%s10] sm:$0x1]
    %v400 = vlaneseq
    %v401 = vshrl.u32 %v400, 7
    %v402 = vsub.s32 0, %v401
    %v403 = vrot.slane %v398, %v402
    %vm405 = vcmask 261120
    %v407 = vsel %vm405, %v393, 0
    %409 = vmatprep.subr.mxu0 0.0
    %410 = vmatpush1.msra.mxu0 %v394
    %411 = vmatprep.subr.mxu0 0.0
    %412 = vmatpush1.msra.mxu0 %v395
    %413 = vmatprep.subr.mxu0 0.0
    %414 = vmatpush1.msra.mxu0 %v396
    %415 = vmatprep.subr.mxu0 0.0
    %416 = vmatpush1.msra.mxu0 %v397
    %417 = vmatprep.subr.mxu0 0.0
    %418 = vmatpush1.msra.mxu0 0.0
    %419 = vmatprep.subr.mxu0 0.0
    %420 = vmatpush1.msra.mxu0 0.0
    %421 = vmatprep.subr.mxu0 0.0
    %422 = vmatpush1.msra.mxu0 0.0
    %423 = vmatprep.subr.mxu0 0.0
    %424 = vmatpush1.msra.mxu0 0.0
    %425 = vmatprep.subr.mxu0 0.0
    %426 = vmatpush1.msra.mxu0 0.0
    %427 = vmatprep.subr.mxu0 0.0
    %428 = vmatpush1.msra.mxu0 0.0
    %429 = vmatprep.subr.mxu0 0.0
    %430 = vmatpush1.msra.mxu0 0.0
    %431 = vmatprep.subr.mxu0 0.0
    %432 = vmatpush1.msra.mxu0 0.0
    %433 = vmatprep.subr.mxu0 0.0
    %434 = vmatpush1.msra.mxu0 0.0
    %435 = vmatprep.subr.mxu0 0.0
    %436 = vmatpush1.msra.mxu0 0.0
    %437 = vmatprep.subr.mxu0 0.0
    %438 = vmatpush1.msra.mxu0 0.0
    %439 = vmatprep.subr.mxu0 0.0
    %440 = vmatpush1.msra.mxu0 0.0
    %441 = vmatprep.subr.mxu0 0.0
    %442 = vmatpush1.msra.mxu0 0.0
    %443 = vmatprep.subr.mxu0 0.0
    %444 = vmatpush1.msra.mxu0 0.0
    %445 = vmatprep.subr.mxu0 0.0
    %446 = vmatpush1.msra.mxu0 0.0
    %447 = vmatprep.subr.mxu0 0.0
    %448 = vmatpush1.msra.mxu0 0.0
    %449 = vmatprep.subr.mxu0 0.0
    %450 = vmatpush1.msra.mxu0 0.0
    %451 = vmatprep.subr.mxu0 0.0
    %452 = vmatpush1.msra.mxu0 0.0
    %453 = vmatprep.subr.mxu0 0.0
    %454 = vmatpush1.msra.mxu0 0.0
    %455 = vmatprep.subr.mxu0 0.0
    %456 = vmatpush1.msra.mxu0 0.0
    %457 = vmatprep.subr.mxu0 0.0
    %458 = vmatpush1.msra.mxu0 0.0
    %459 = vmatprep.subr.mxu0 0.0
    %460 = vmatpush1.msra.mxu0 0.0
    %461 = vmatprep.subr.mxu0 0.0
    %462 = vmatpush1.msra.mxu0 0.0
    %463 = vmatprep.subr.mxu0 0.0
    %464 = vmatpush1.msra.mxu0 0.0
    %465 = vmatprep.subr.mxu0 0.0
    %466 = vmatpush1.msra.mxu0 0.0
    %467 = vmatprep.subr.mxu0 0.0
    %468 = vmatpush1.msra.mxu0 0.0
    %469 = vmatprep.subr.mxu0 0.0
    %470 = vmatpush1.msra.mxu0 0.0
    %471 = vmatprep.subr.mxu0 0.0
    %472 = vmatpush1.msra.mxu0 0.0
    %473 = vmatprep.mubr.f32.mxu0 0.0
    %474 = vmatmul.mubr.f32.gmra.mrb[0].mxu0 %v407
    %v475 = vpop.f32.mrb[0].mxu0
    %v476 = vadd.f32 %v403, %v475
    %v477 = vpop.f32.mrb[0].mxu0
    %478 = vdwg.mxu0
    %v479 = vmax.f32 %v476, 0.0
    %vm480 = vcmask 130048
    %481 = vst.msk [vmem:[#allocation2] sm:$0xff] %vm480, %v479
    // Predicated region
    $region46: #{_forward_impl.1} parent=1 // pred_check
      _
    $region47: #{_forward_impl.1} parent=1 // pred_check_branch
      %483 = sbr.rel (0) target = $region49
    $region48: #{_forward_impl.1} parent=1 // pred_region
      %s485 = ssub.s32 128, 128
      %486 = vsyncadd [#allocation3], %s485
      %s488 = sshll.u32 [#allocation2], 4
      %s489 = int_to_ptr.vmem [resolvable:$true] %s488
      %491 = dma.vmem_to_hbm [thread:$0]  %s489, 128, %s11, [#allocation3]
    $region49: #{_forward_impl.1} parent=1 // pred_fallthru
      _
    // Predicated region
    $region50: #{_forward_impl.1} parent=1 // pred_check
      _
    $region51: #{_forward_impl.1} parent=1 // pred_check_branch
      %493 = sbr.rel (0) target = $region53
    $region52: #{_forward_impl.1} parent=1 // pred_region
      %494 = dma.done [#allocation3], 128
    $region53: #{_forward_impl.1} parent=1 // pred_fallthru
      _
    %495 = vsyncpa [#allocation3], 1

</llo_original>
